<compile_context>
chip_gen: v6e
topology: v6e:2x2x1
jax: 0.10.0
libtpu: 0.0.40
codegen_flags: <defaults>
</compile_context>

<pallas_src>
import jax
import jax.numpy as jnp
from jax import lax
from jax.experimental import pallas as pl
from jax.experimental.pallas import tpu as pltpu


def _round_up(x, m):
    return ((x + m - 1) // m) * m


def rotation_mlp_kernel(prelu_ref, theta_ref, w1_ref, b1_ref, w2_ref, b2_ref,
                        w3p_ref, b3p_ref, out_ref):
    """One batch tile.

    theta_ref : (bt, D)          untransposed input tile (batch on sublanes)
    w*_ref    : PyTorch layout (out, in), VMEM-resident via constant index_maps
    b*_ref    : (out, 1)         biases, broadcast along lanes
    w3p/b3p   : third Linear with the sin/cos affine and the
                [cos, -sin, sin, cos] sign/duplication folded in
    out_ref   : (4*degree, bt)   lane-dense output tile, single full-block store
    """
    a1 = prelu_ref[0]           # PReLU slope, layer 1 (SMEM scalar)
    a2 = prelu_ref[1]           # PReLU slope, layer 2

    x = theta_ref[...]                                    # (bt, D)

    # (H, D) . (bt, D) contracting D -> (H, bt): the batch lands on the 128
    # lanes, so the layout change happens on-chip (no wrapper HBM transpose).
    h1 = lax.dot_general(w1_ref[...], x, (((1,), (1,)), ((), ())),
                         preferred_element_type=jnp.float32) + b1_ref[...]
    h1 = jnp.where(h1 > 0, h1, a1 * h1)                   # PReLU

    # (H2, H) @ (H, bt) -> (H2, bt)
    h2 = jnp.dot(w2_ref[...], h1, preferred_element_type=jnp.float32) + b2_ref[...]
    h2 = jnp.where(h2 > 0, h2, a2 * h2)                   # PReLU

    # Folded third matmul emits the full (4*degree, bt) output block:
    # one contiguous, lane-dense store.
    out_ref[...] = (jnp.dot(w3p_ref[...], h2, preferred_element_type=jnp.float32)
                    + b3p_ref[...])


def rotation_mlp_forward(theta, params, *, degree, b_tile=8192):
    """theta: (B, input_dim) f32.  Returns (B, 4*degree) f32."""
    w1, b1, w2, b2, w3, b3, scalars = params
    Bn, D = theta.shape
    H = w1.shape[0]
    H2 = w2.shape[0]
    out_dim = 4 * degree

    # Fold the sin/cos affine (A, B, A2, B2) and the [cos, -sin, sin, cos]
    # sign/duplication into W3'/b3' (tiny one-time host-side op on a 12x32
    # weight); kernel then does a single matmul + single store for the output.
    A, Bp, A2, B2 = scalars[2], scalars[3], scalars[4], scalars[5]
    w3_sin, w3_cos = A * w3[:degree], A2 * w3[degree:]
    b3_sin, b3_cos = A * b3[:degree] + Bp, A2 * b3[degree:] + B2
    w3p = jnp.concatenate([w3_cos, -w3_sin, w3_sin, w3_cos], axis=0)   # (4d, H2)
    b3p = jnp.concatenate([b3_cos, -b3_sin, b3_sin, b3_cos], axis=0)   # (4d, 1)
    prelu = scalars[:2]                                                # [a1, a2]

    # Batch tile: large (amortises the ~0.35 us per-grid-step overhead), capped
    # at b_tile because the (bt, D) VMEM buffer lane-pads D=8 -> 128 (16x), and
    # sized so the grid has ~4 steps when B allows (>=2 parallel steps per
    # TensorCore on v7x, and the depth-2 DMA pipeline stays live).
    bt = min(int(b_tile), max(128, _round_up(pl.cdiv(Bn, 4), 128)))
    b_pad = _round_up(Bn, bt)
    grid = (b_pad // bt,)

    theta_p = theta if b_pad == Bn else jnp.pad(theta, ((0, b_pad - Bn), (0, 0)))

    flops = 2 * b_pad * (D * H + H * H2 + H2 * out_dim) \
        + 4 * b_pad * (H + H2 + out_dim)
    bytes_accessed = 4 * (b_pad * (D + out_dim)
                          + H * D + H + H2 * H + H2 + out_dim * H2 + out_dim + 2)

    smem = pl.BlockSpec(memory_space=pltpu.MemorySpace.SMEM)
    out_t = pl.pallas_call(
        rotation_mlp_kernel,
        out_shape=jax.ShapeDtypeStruct((out_dim, b_pad), jnp.float32),
        grid=grid,
        in_specs=[
            smem,                                              # PReLU slopes (SMEM)
            pl.BlockSpec((bt, D), lambda i: (i, 0)),           # theta tile (untransposed)
            pl.BlockSpec((H, D), lambda i: (0, 0)),            # W1 (resident)
            pl.BlockSpec((H, 1), lambda i: (0, 0)),            # b1
            pl.BlockSpec((H2, H), lambda i: (0, 0)),           # W2
            pl.BlockSpec((H2, 1), lambda i: (0, 0)),           # b2
            pl.BlockSpec((out_dim, H2), lambda i: (0, 0)),     # W3' (folded)
            pl.BlockSpec((out_dim, 1), lambda i: (0, 0)),      # b3' (folded)
        ],
        out_specs=pl.BlockSpec((out_dim, bt), lambda i: (0, i)),
        compiler_params=pltpu.CompilerParams(
            dimension_semantics=("parallel",),
            vmem_limit_bytes=32 * 1024 * 1024),                # safe on v5e/v6e/v7x
        cost_estimate=pl.CostEstimate(
            flops=flops, transcendentals=0, bytes_accessed=bytes_accessed),
    )(prelu, theta_p, w1, b1, w2, b2, w3p, b3p)

    # TODO(synk): consumers that accept the (4*degree, B) layout can take
    # out_t[:, :Bn] directly and skip this XLA transpose (review option (b)).
    return out_t.T[:Bn]                                    # (B, 4*degree)


def init_params(key, input_dim, hidden_size=64, degree=3):
    """Deterministic synthetic parameters (PyTorch Linear layout: (out, in))."""
    ks = jax.random.split(key, 6)
    h2 = hidden_size // 2
    w1 = jax.random.normal(ks[0], (hidden_size, input_dim), jnp.float32) * 0.1
    b1 = jax.random.normal(ks[1], (hidden_size, 1), jnp.float32) * 0.1
    w2 = jax.random.normal(ks[2], (h2, hidden_size), jnp.float32) * 0.1
    b2 = jax.random.normal(ks[3], (h2, 1), jnp.float32) * 0.1
    w3 = jax.random.normal(ks[4], (degree * 2, h2), jnp.float32) * 0.1
    b3 = jax.random.normal(ks[5], (degree * 2, 1), jnp.float32) * 0.1
    # [prelu1_a, prelu2_a, A, B, A2, B2] — PyTorch defaults: PReLU a=0.25
    # (num_parameters=1, scalar slope), A=1, B=0, A2=1, B2=0.
    scalars = jnp.array([0.25, 0.25, 1.0, 0.0, 1.0, 0.0], jnp.float32)
    return (w1, b1, w2, b2, w3, b3, scalars)


def reference_forward(theta, params, *, degree):
    """Pure-JAX reference mirroring the PyTorch forward."""
    w1, b1, w2, b2, w3, b3, s = params
    a1, a2, A, Bp, A2, B2 = [s[i] for i in range(6)]
    h1 = theta @ w1.T + b1[:, 0]
    h1 = jnp.where(h1 > 0, h1, a1 * h1)
    h2 = h1 @ w2.T + b2[:, 0]
    h2 = jnp.where(h2 > 0, h2, a2 * h2)
    coeffs = h2 @ w3.T + b3[:, 0]
    sin_a = A * coeffs[..., :degree] + Bp
    cos_a = A2 * coeffs[..., degree:] + B2
    rot = jnp.concatenate([cos_a, -sin_a, sin_a, cos_a], axis=-1)
    return rot.reshape(theta.shape[0], -1)


if __name__ == "__main__":
    batch = 8
    input_dim = 8
    hidden_size = 64
    degree = 3

    key = jax.random.PRNGKey(0)
    k_theta, k_params = jax.random.split(key)
    theta = jax.random.normal(k_theta, (batch, input_dim), jnp.float32)
    params = init_params(k_params, input_dim, hidden_size, degree)

    out = rotation_mlp_forward(theta, params, degree=degree)
    out = jax.block_until_ready(out)
    ref = reference_forward(theta, params, degree=degree)
    assert out.shape == (batch, 4 * degree), out.shape
    assert jnp.allclose(out, ref, atol=1e-4, rtol=1e-4), "mismatch vs reference"

    # Also exercise the multi-tile grid + batch-padding path with a small tile.
    theta2 = jax.random.normal(jax.random.PRNGKey(1), (300, input_dim), jnp.float32)
    out2 = jax.block_until_ready(
        rotation_mlp_forward(theta2, params, degree=degree, b_tile=128))
    ref2 = reference_forward(theta2, params, degree=degree)
    assert out2.shape == (300, 4 * degree), out2.shape
    assert jnp.allclose(out2, ref2, atol=1e-4, rtol=1e-4), "mismatch vs reference (tiled)"

    print("KERNEL_OK")
</pallas_src>

<mosaic_0001>
module attributes {stable_mosaic.version = 11 : i64} {
  func.func @rotation_mlp_kernel(%arg0: i32, %arg1: memref<2xf32, #tpu.memory_space<smem>>, %arg2: memref<128x8xf32, #tpu.memory_space<vmem>>, %arg3: memref<64x8xf32, #tpu.memory_space<vmem>>, %arg4: memref<64x1xf32, #tpu.memory_space<vmem>>, %arg5: memref<32x64xf32, #tpu.memory_space<vmem>>, %arg6: memref<32x1xf32, #tpu.memory_space<vmem>>, %arg7: memref<12x32xf32, #tpu.memory_space<vmem>>, %arg8: memref<12x1xf32, #tpu.memory_space<vmem>>, %arg9: memref<12x128xf32, #tpu.memory_space<vmem>>) attributes {dimension_semantics = [#tpu.dimension_semantics<parallel>], iteration_bounds = array<i64: 1>, scalar_prefetch = 0 : i64, scratch_operands = 0 : i64, tpu.core_type = #tpu.core_type<tc>, window_params = [{transform_indices = @transform_0, window_bounds = array<i64: 2>}, {transform_indices = @transform_1, window_bounds = array<i64: 128, 8>}, {pipeline_mode = #tpu.pipeline_mode<synchronous>, transform_indices = @transform_2, window_bounds = array<i64: 64, 8>}, {pipeline_mode = #tpu.pipeline_mode<synchronous>, transform_indices = @transform_3, window_bounds = array<i64: 64, 1>}, {pipeline_mode = #tpu.pipeline_mode<synchronous>, transform_indices = @transform_4, window_bounds = array<i64: 32, 64>}, {pipeline_mode = #tpu.pipeline_mode<synchronous>, transform_indices = @transform_5, window_bounds = array<i64: 32, 1>}, {pipeline_mode = #tpu.pipeline_mode<synchronous>, transform_indices = @transform_6, window_bounds = array<i64: 12, 32>}, {pipeline_mode = #tpu.pipeline_mode<synchronous>, transform_indices = @transform_7, window_bounds = array<i64: 12, 1>}, {transform_indices = @transform_8, window_bounds = array<i64: 12, 128>}]} {
    %c0 = arith.constant 0 : index
    %0 = memref.load %arg1[%c0] : memref<2xf32, #tpu.memory_space<smem>>
    %c1 = arith.constant 1 : index
    %1 = memref.load %arg1[%c1] : memref<2xf32, #tpu.memory_space<smem>>
    %c0_0 = arith.constant 0 : index
    %c0_1 = arith.constant 0 : index
    %2 = vector.load %arg2[%c0_0, %c0_1] : memref<128x8xf32, #tpu.memory_space<vmem>>, vector<128x8xf32>
    %c0_2 = arith.constant 0 : index
    %c0_3 = arith.constant 0 : index
    %3 = vector.load %arg3[%c0_2, %c0_3] : memref<64x8xf32, #tpu.memory_space<vmem>>, vector<64x8xf32>
    %cst = arith.constant dense<0.000000e+00> : vector<64x128xf32>
    %4 = tpu.matmul %3, %2, %cst {dimension_numbers = #tpu.dot_dimension_numbers<[1], [1], [0], [0], [0, 0, 1, 0], [], []>} : vector<64x8xf32>, vector<128x8xf32>, vector<64x128xf32> -> vector<64x128xf32>
    %c0_4 = arith.constant 0 : index
    %c0_5 = arith.constant 0 : index
    %5 = vector.load %arg4[%c0_4, %c0_5] : memref<64x1xf32, #tpu.memory_space<vmem>>, vector<64x1xf32>
    %6 = vector.broadcast %5 : vector<64x1xf32> to vector<64x128xf32>
    %7 = arith.addf %4, %6 : vector<64x128xf32>
    %cst_6 = arith.constant 0.000000e+00 : f32
    %8 = vector.broadcast %cst_6 : f32 to vector<64x128xf32>
    %9 = arith.cmpf ogt, %7, %8 : vector<64x128xf32>
    %10 = vector.broadcast %0 : f32 to vector<64x128xf32>
    %11 = arith.mulf %10, %7 : vector<64x128xf32>
    %12 = arith.select %9, %7, %11 : vector<64x128xi1>, vector<64x128xf32>
    %c0_7 = arith.constant 0 : index
    %c0_8 = arith.constant 0 : index
    %13 = vector.load %arg5[%c0_7, %c0_8] : memref<32x64xf32, #tpu.memory_space<vmem>>, vector<32x64xf32>
    %cst_9 = arith.constant dense<0.000000e+00> : vector<32x128xf32>
    %14 = tpu.matmul %13, %12, %cst_9 {dimension_numbers = #tpu.dot_dimension_numbers<[1], [0], [0], [1], [0, 0, 1, 1], [], []>} : vector<32x64xf32>, vector<64x128xf32>, vector<32x128xf32> -> vector<32x128xf32>
    %c0_10 = arith.constant 0 : index
    %c0_11 = arith.constant 0 : index
    %15 = vector.load %arg6[%c0_10, %c0_11] : memref<32x1xf32, #tpu.memory_space<vmem>>, vector<32x1xf32>
    %16 = vector.broadcast %15 : vector<32x1xf32> to vector<32x128xf32>
    %17 = arith.addf %14, %16 : vector<32x128xf32>
    %cst_12 = arith.constant 0.000000e+00 : f32
    %18 = vector.broadcast %cst_12 : f32 to vector<32x128xf32>
    %19 = arith.cmpf ogt, %17, %18 : vector<32x128xf32>
    %20 = vector.broadcast %1 : f32 to vector<32x128xf32>
    %21 = arith.mulf %20, %17 : vector<32x128xf32>
    %22 = arith.select %19, %17, %21 : vector<32x128xi1>, vector<32x128xf32>
    %c0_13 = arith.constant 0 : index
    %c0_14 = arith.constant 0 : index
    %23 = vector.load %arg7[%c0_13, %c0_14] : memref<12x32xf32, #tpu.memory_space<vmem>>, vector<12x32xf32>
    %cst_15 = arith.constant dense<0.000000e+00> : vector<12x128xf32>
    %24 = tpu.matmul %23, %22, %cst_15 {dimension_numbers = #tpu.dot_dimension_numbers<[1], [0], [0], [1], [0, 0, 1, 1], [], []>} : vector<12x32xf32>, vector<32x128xf32>, vector<12x128xf32> -> vector<12x128xf32>
    %c0_16 = arith.constant 0 : index
    %c0_17 = arith.constant 0 : index
    %25 = vector.load %arg8[%c0_16, %c0_17] : memref<12x1xf32, #tpu.memory_space<vmem>>, vector<12x1xf32>
    %26 = vector.broadcast %25 : vector<12x1xf32> to vector<12x128xf32>
    %27 = arith.addf %24, %26 : vector<12x128xf32>
    %c0_18 = arith.constant 0 : index
    %c0_19 = arith.constant 0 : index
    %28 = vector.load %arg9[%c0_18, %c0_19] : memref<12x128xf32, #tpu.memory_space<vmem>>, vector<12x128xf32>
    tpu.vector_store %arg9[%c0_18, %c0_19], %27 {strides = array<i32>} : memref<12x128xf32, #tpu.memory_space<vmem>>, vector<12x128xf32>,
    return
  }
  func.func @transform_0(%arg0: i32) -> i32 {
    %c0_i32 = arith.constant 0 : i32
    %c0_i32_0 = arith.constant 0 : i32
    return %c0_i32 : i32
  }
  func.func @transform_1(%arg0: i32) -> (i32, i32) {
    %c0_i32 = arith.constant 0 : i32
    %c0_i32_0 = arith.constant 0 : i32
    return %arg0, %c0_i32 : i32, i32
  }
  func.func @transform_2(%arg0: i32) -> (i32, i32) {
    %c0_i32 = arith.constant 0 : i32
    %c0_i32_0 = arith.constant 0 : i32
    %c0_i32_1 = arith.constant 0 : i32
    return %c0_i32, %c0_i32_0 : i32, i32
  }
  func.func @transform_3(%arg0: i32) -> (i32, i32) {
    %c0_i32 = arith.constant 0 : i32
    %c0_i32_0 = arith.constant 0 : i32
    %c0_i32_1 = arith.constant 0 : i32
    return %c0_i32, %c0_i32_0 : i32, i32
  }
  func.func @transform_4(%arg0: i32) -> (i32, i32) {
    %c0_i32 = arith.constant 0 : i32
    %c0_i32_0 = arith.constant 0 : i32
    %c0_i32_1 = arith.constant 0 : i32
    return %c0_i32, %c0_i32_0 : i32, i32
  }
  func.func @transform_5(%arg0: i32) -> (i32, i32) {
    %c0_i32 = arith.constant 0 : i32
    %c0_i32_0 = arith.constant 0 : i32
    %c0_i32_1 = arith.constant 0 : i32
    return %c0_i32, %c0_i32_0 : i32, i32
  }
  func.func @transform_6(%arg0: i32) -> (i32, i32) {
    %c0_i32 = arith.constant 0 : i32
    %c0_i32_0 = arith.constant 0 : i32
    %c0_i32_1 = arith.constant 0 : i32
    return %c0_i32, %c0_i32_0 : i32, i32
  }
  func.func @transform_7(%arg0: i32) -> (i32, i32) {
    %c0_i32 = arith.constant 0 : i32
    %c0_i32_0 = arith.constant 0 : i32
    %c0_i32_1 = arith.constant 0 : i32
    return %c0_i32, %c0_i32_0 : i32, i32
  }
  func.func @transform_8(%arg0: i32) -> (i32, i32) {
    %c0_i32 = arith.constant 0 : i32
    %c0_i32_0 = arith.constant 0 : i32
    return %c0_i32, %arg0 : i32, i32
  }
}

</mosaic_0001>

<llo_original>
// kernel: tpu_custom_call.1
$region0: #{tpu_custom_call.1}
  #allocation0 [shape = 'u32[]', space=smem, size = 0x4, offset = 0x4, fixed_abs, tag = 'smem constant byte address 0x4 - core index']
  #allocation1 [shape = 'u32[144,128]{1,0:T(1,128)}', space=vmem, size = 0x12000, scoped, tag = 'internal scratch']
  %s0 = inlined_call_operand.vmem [shape: f32[2], index: 0, kind: input, shape index: {}]
  %s1 = inlined_call_operand.vmem [shape: f32[128,8], index: 1, kind: input, shape index: {}]
  %s2 = inlined_call_operand.vmem [shape: f32[64,8], index: 2, kind: input, shape index: {}]
  %s3 = inlined_call_operand.vmem [shape: f32[64,1], index: 3, kind: input, shape index: {}]
  %s4 = inlined_call_operand.vmem [shape: f32[32,64], index: 4, kind: input, shape index: {}]
  %s5 = inlined_call_operand.vmem [shape: f32[32,1], index: 5, kind: input, shape index: {}]
  %s6 = inlined_call_operand.vmem [shape: f32[12,32], index: 6, kind: input, shape index: {}]
  %s7 = inlined_call_operand.vmem [shape: f32[12,1], index: 7, kind: input, shape index: {}]
  %s8 = inlined_call_operand.hbm [shape: f32[12,128], index: 8, kind: output, shape index: {}]
  %s9 = sld [smem:[#allocation0]]
  $region46: #{tpu_custom_call.1} parent=0
    _
  %s11 = ssub.s32 1, %s9
  %s12 = scalar_select 0, %s11, %s9
  $region1: #{tpu_custom_call.1} parent=0
    #allocation2 [shape = 'u8[512]{0}', space=smem, size = 0x200, scoped, tag = 'input window, operand 0, single buffered']
    #allocation3 [shape = 's32[1]{0}', space=sflag, size = 0x4, scoped, tag = 'scoped memory for tpu_custom_call.1']
    #allocation4 [shape = 's32[1]{0}', space=sflag, size = 0x4, scoped, tag = 'scoped memory for tpu_custom_call.1']
    #allocation5 [shape = 'u8[8192]{0}', space=vmem, size = 0x2000, scoped, tag = 'output window, operand 0, single buffered']
    %13 = vsyncpa [#allocation4], 0
    %14 = vsyncpa [#allocation3], 0
    // Predicated region
    $region2: #{tpu_custom_call.1} parent=1 // pred_check
      _
    $region3: #{tpu_custom_call.1} parent=1 // pred_check_branch
      %16 = sbr.rel (0) target = $region5
    $region4: #{tpu_custom_call.1} parent=1 // pred_region
      %s18 = ssub.s32 16, 16
      %19 = vsyncadd [#allocation4], %s18
      %s21 = sshll.u32 %s0, 4
      %s22 = int_to_ptr.vmem [resolvable:$true] %s21
      %24 = dma.vmem_to_smem %s22, 16, [#allocation2], [#allocation4]
    $region5: #{tpu_custom_call.1} parent=1 // pred_fallthru
      _
    // Predicated region
    $region6: #{tpu_custom_call.1} parent=1 // pred_check
      _
    $region7: #{tpu_custom_call.1} parent=1 // pred_check_branch
      %26 = sbr.rel (0) target = $region9
    $region8: #{tpu_custom_call.1} parent=1 // pred_region
      _
    $region9: #{tpu_custom_call.1} parent=1 // pred_fallthru
      _
    // Predicated region
    $region10: #{tpu_custom_call.1} parent=1 // pred_check
      _
    $region11: #{tpu_custom_call.1} parent=1 // pred_check_branch
      %28 = sbr.rel (0) target = $region13
    $region12: #{tpu_custom_call.1} parent=1 // pred_region
      _
    $region13: #{tpu_custom_call.1} parent=1 // pred_fallthru
      _
    // Predicated region
    $region14: #{tpu_custom_call.1} parent=1 // pred_check
      _
    $region15: #{tpu_custom_call.1} parent=1 // pred_check_branch
      %30 = sbr.rel (0) target = $region17
    $region16: #{tpu_custom_call.1} parent=1 // pred_region
      _
    $region17: #{tpu_custom_call.1} parent=1 // pred_fallthru
      _
    // Predicated region
    $region18: #{tpu_custom_call.1} parent=1 // pred_check
      _
    $region19: #{tpu_custom_call.1} parent=1 // pred_check_branch
      %32 = sbr.rel (0) target = $region21
    $region20: #{tpu_custom_call.1} parent=1 // pred_region
      _
    $region21: #{tpu_custom_call.1} parent=1 // pred_fallthru
      _
    // Predicated region
    $region22: #{tpu_custom_call.1} parent=1 // pred_check
      _
    $region23: #{tpu_custom_call.1} parent=1 // pred_check_branch
      %34 = sbr.rel (0) target = $region25
    $region24: #{tpu_custom_call.1} parent=1 // pred_region
      _
    $region25: #{tpu_custom_call.1} parent=1 // pred_fallthru
      _
    // Predicated region
    $region26: #{tpu_custom_call.1} parent=1 // pred_check
      _
    $region27: #{tpu_custom_call.1} parent=1 // pred_check_branch
      %36 = sbr.rel (0) target = $region29
    $region28: #{tpu_custom_call.1} parent=1 // pred_region
      _
    $region29: #{tpu_custom_call.1} parent=1 // pred_fallthru
      _
    // Predicated region
    $region30: #{tpu_custom_call.1} parent=1 // pred_check
      _
    $region31: #{tpu_custom_call.1} parent=1 // pred_check_branch
      %38 = sbr.rel (0) target = $region33
    $region32: #{tpu_custom_call.1} parent=1 // pred_region
      _
    $region33: #{tpu_custom_call.1} parent=1 // pred_fallthru
      _
    // Predicated region
    $region34: #{tpu_custom_call.1} parent=1 // pred_check
      _
    $region35: #{tpu_custom_call.1} parent=1 // pred_check_branch
      %40 = sbr.rel (0) target = $region37
    $region36: #{tpu_custom_call.1} parent=1 // pred_region
      %41 = dma.done [#allocation4], 16
    $region37: #{tpu_custom_call.1} parent=1 // pred_fallthru
      _
    %42 = sfence
    %s43 = sld [smem:[#allocation2]]
    %s44 = sld [smem:[#allocation2 + $0x1]]
    %v45 = vld [vmem:[%s1] sm:$0xff]
    %v46 = vld [vmem:[%s1 + $0x8] sm:$0xff]
    %v47 = vld [vmem:[%s1 + $0x10] sm:$0xff]
    %v48 = vld [vmem:[%s1 + $0x18] sm:$0xff]
    %v49 = vld [vmem:[%s1 + $0x20] sm:$0xff]
    %v50 = vld [vmem:[%s1 + $0x28] sm:$0xff]
    %v51 = vld [vmem:[%s1 + $0x30] sm:$0xff]
    %v52 = vld [vmem:[%s1 + $0x38] sm:$0xff]
    %v53 = vld [vmem:[%s1 + $0x40] sm:$0xff]
    %v54 = vld [vmem:[%s1 + $0x48] sm:$0xff]
    %v55 = vld [vmem:[%s1 + $0x50] sm:$0xff]
    %v56 = vld [vmem:[%s1 + $0x58] sm:$0xff]
    %v57 = vld [vmem:[%s1 + $0x60] sm:$0xff]
    %v58 = vld [vmem:[%s1 + $0x68] sm:$0xff]
    %v59 = vld [vmem:[%s1 + $0x70] sm:$0xff]
    %v60 = vld [vmem:[%s1 + $0x78] sm:$0xff]
    %v61 = vld [vmem:[%s2] sm:$0xff]
    %v62 = vld [vmem:[%s2 + $0x8] sm:$0xff]
    %v63 = vld [vmem:[%s2 + $0x10] sm:$0xff]
    %v64 = vld [vmem:[%s2 + $0x18] sm:$0xff]
    %v65 = vld [vmem:[%s2 + $0x20] sm:$0xff]
    %v66 = vld [vmem:[%s2 + $0x28] sm:$0xff]
    %v67 = vld [vmem:[%s2 + $0x30] sm:$0xff]
    %v68 = vld [vmem:[%s2 + $0x38] sm:$0xff]
    %v69 = vld [vmem:[%s3] sm:$0xff]
    %v70 = vld [vmem:[%s3 + $0x8] sm:$0xff]
    %v71 = vld [vmem:[%s3 + $0x10] sm:$0xff]
    %v72 = vld [vmem:[%s3 + $0x18] sm:$0xff]
    %v73 = vld [vmem:[%s3 + $0x20] sm:$0xff]
    %v74 = vld [vmem:[%s3 + $0x28] sm:$0xff]
    %v75 = vld [vmem:[%s3 + $0x30] sm:$0xff]
    %v76 = vld [vmem:[%s3 + $0x38] sm:$0xff]
    %78 = vset.pattern.permute.xlu0 0
    %79 = vperm.xlu0 %78, %v69
    %v80 = vpop.permute.xlu0 %79
    %83 = vset.pattern.permute.xlu0 0
    %84 = vperm.xlu0 %83, %v70
    %v85 = vpop.permute.xlu0 %84
    %88 = vset.pattern.permute.xlu0 0
    %89 = vperm.xlu0 %88, %v71
    %v90 = vpop.permute.xlu0 %89
    %93 = vset.pattern.permute.xlu0 0
    %94 = vperm.xlu0 %93, %v72
    %v95 = vpop.permute.xlu0 %94
    %98 = vset.pattern.permute.xlu0 0
    %99 = vperm.xlu0 %98, %v73
    %v100 = vpop.permute.xlu0 %99
    %103 = vset.pattern.permute.xlu0 0
    %104 = vperm.xlu0 %103, %v74
    %v105 = vpop.permute.xlu0 %104
    %108 = vset.pattern.permute.xlu0 0
    %109 = vperm.xlu0 %108, %v75
    %v110 = vpop.permute.xlu0 %109
    %113 = vset.pattern.permute.xlu0 0
    %114 = vperm.xlu0 %113, %v76
    %v115 = vpop.permute.xlu0 %114
    %vm117 = vcmask 64512
    %v119 = vsel %vm117, %v61, 0
    %v122 = vsel %vm117, %v62, 0
    %v125 = vsel %vm117, %v63, 0
    %v128 = vsel %vm117, %v64, 0
    %v131 = vsel %vm117, %v65, 0
    %v134 = vsel %vm117, %v66, 0
    %v137 = vsel %vm117, %v67, 0
    %v140 = vsel %vm117, %v68, 0
    %v143 = vsel %vm117, %v45, 0
    %v146 = vsel %vm117, %v46, 0
    %v149 = vsel %vm117, %v47, 0
    %v152 = vsel %vm117, %v48, 0
    %v155 = vsel %vm117, %v49, 0
    %v158 = vsel %vm117, %v50, 0
    %v161 = vsel %vm117, %v51, 0
    %v164 = vsel %vm117, %v52, 0
    %v167 = vsel %vm117, %v53, 0
    %v170 = vsel %vm117, %v54, 0
    %v173 = vsel %vm117, %v55, 0
    %v176 = vsel %vm117, %v56, 0
    %v179 = vsel %vm117, %v57, 0
    %v182 = vsel %vm117, %v58, 0
    %v185 = vsel %vm117, %v59, 0
    %v188 = vsel %vm117, %v60, 0
    %190 = vmatprep.subr.mxu0 0.0
    %191 = vmatpush1.xpose.msra.mxu0 %v188
    %192 = vmatprep.subr.mxu0 0.0
    %193 = vmatpush1.xpose.msra.mxu0 %v185
    %194 = vmatprep.subr.mxu0 0.0
    %195 = vmatpush1.xpose.msra.mxu0 %v182
    %196 = vmatprep.subr.mxu0 0.0
    %197 = vmatpush1.xpose.msra.mxu0 %v179
    %198 = vmatprep.subr.mxu0 0.0
    %199 = vmatpush1.xpose.msra.mxu0 %v176
    %200 = vmatprep.subr.mxu0 0.0
    %201 = vmatpush1.xpose.msra.mxu0 %v173
    %202 = vmatprep.subr.mxu0 0.0
    %203 = vmatpush1.xpose.msra.mxu0 %v170
    %204 = vmatprep.subr.mxu0 0.0
    %205 = vmatpush1.xpose.msra.mxu0 %v167
    %206 = vmatprep.subr.mxu0 0.0
    %207 = vmatpush1.xpose.msra.mxu0 %v164
    %208 = vmatprep.subr.mxu0 0.0
    %209 = vmatpush1.xpose.msra.mxu0 %v161
    %210 = vmatprep.subr.mxu0 0.0
    %211 = vmatpush1.xpose.msra.mxu0 %v158
    %212 = vmatprep.subr.mxu0 0.0
    %213 = vmatpush1.xpose.msra.mxu0 %v155
    %214 = vmatprep.subr.mxu0 0.0
    %215 = vmatpush1.xpose.msra.mxu0 %v152
    %216 = vmatprep.subr.mxu0 0.0
    %217 = vmatpush1.xpose.msra.mxu0 %v149
    %218 = vmatprep.subr.mxu0 0.0
    %219 = vmatpush1.xpose.msra.mxu0 %v146
    %220 = vmatprep.subr.mxu0 0.0
    %221 = vmatpush1.xpose.msra.mxu0 %v143
    %222 = vmatprep.subr.mxu0 0.0
    %223 = vmatpush2.xpose.msra.mxu0 0.0
    %224 = vmatprep.subr.mxu0 0.0
    %225 = vmatpush2.xpose.msra.mxu0 0.0
    %226 = vmatprep.subr.mxu0 0.0
    %227 = vmatpush2.xpose.msra.mxu0 0.0
    %228 = vmatprep.subr.mxu0 0.0
    %229 = vmatpush2.xpose.msra.mxu0 0.0
    %230 = vmatprep.subr.mxu0 0.0
    %231 = vmatpush2.xpose.msra.mxu0 0.0
    %232 = vmatprep.subr.mxu0 0.0
    %233 = vmatpush2.xpose.msra.mxu0 0.0
    %234 = vmatprep.subr.mxu0 0.0
    %235 = vmatpush2.xpose.msra.mxu0 0.0
    %236 = vmatprep.subr.mxu0 0.0
    %237 = vmatpush2.xpose.msra.mxu0 0.0
    %238 = vmatprep.subr.mxu0 0.0
    %239 = vmatpush2.xpose.msra.mxu0 0.0
    %240 = vmatprep.subr.mxu0 0.0
    %241 = vmatpush2.xpose.msra.mxu0 0.0
    %242 = vmatprep.subr.mxu0 0.0
    %243 = vmatpush2.xpose.msra.mxu0 0.0
    %244 = vmatprep.subr.mxu0 0.0
    %245 = vmatpush2.xpose.msra.mxu0 0.0
    %246 = vmatprep.subr.mxu0 0.0
    %247 = vmatpush2.xpose.msra.mxu0 0.0
    %248 = vmatprep.subr.mxu0 0.0
    %249 = vmatpush2.xpose.msra.mxu0 0.0
    %250 = vmatprep.subr.mxu0 0.0
    %251 = vmatpush2.xpose.msra.mxu0 0.0
    %252 = vmatprep.subr.mxu0 0.0
    %253 = vmatpush2.xpose.msra.mxu0 0.0
    %254 = vmatprep.mubr.f32.mxu0 0.0
    %255 = vmatmul.mubr.f32.gmra.mxu0 %v119
    %v256 = vpop.f32.mrf.mxu0
    %v257 = vadd.f32 %v80, %v256
    %v258 = vpop.f32.mrf.mxu0
    %259 = vmatprep.mubr.f32.mxu0 0.0
    %260 = vmatmul.mubr.f32.gmra.mxu0 %v122
    %v261 = vpop.f32.mrf.mxu0
    %v262 = vadd.f32 %v85, %v261
    %v263 = vpop.f32.mrf.mxu0
    %264 = vmatprep.mubr.f32.mxu0 0.0
    %265 = vmatmul.mubr.f32.gmra.mxu0 %v125
    %v266 = vpop.f32.mrf.mxu0
    %v267 = vadd.f32 %v90, %v266
    %v268 = vpop.f32.mrf.mxu0
    %269 = vmatprep.mubr.f32.mxu0 0.0
    %270 = vmatmul.mubr.f32.gmra.mxu0 %v128
    %v271 = vpop.f32.mrf.mxu0
    %v272 = vadd.f32 %v95, %v271
    %v273 = vpop.f32.mrf.mxu0
    %274 = vmatprep.mubr.f32.mxu0 0.0
    %275 = vmatmul.mubr.f32.gmra.mxu0 %v131
    %v276 = vpop.f32.mrf.mxu0
    %v277 = vadd.f32 %v100, %v276
    %v278 = vpop.f32.mrf.mxu0
    %279 = vmatprep.mubr.f32.mxu0 0.0
    %280 = vmatmul.mubr.f32.gmra.mxu0 %v134
    %v281 = vpop.f32.mrf.mxu0
    %v282 = vadd.f32 %v105, %v281
    %v283 = vpop.f32.mrf.mxu0
    %284 = vmatprep.mubr.f32.mxu0 0.0
    %285 = vmatmul.mubr.f32.gmra.mxu0 %v137
    %v286 = vpop.f32.mrf.mxu0
    %v287 = vadd.f32 %v110, %v286
    %v288 = vpop.f32.mrf.mxu0
    %289 = vmatprep.mubr.f32.mxu0 0.0
    %290 = vmatmul.mubr.f32.gmra.mxu0 %v140
    %v291 = vpop.f32.mrf.mxu0
    %v292 = vadd.f32 %v115, %v291
    %v293 = vpop.f32.mrf.mxu0
    %294 = vdwg.mxu0
    %vm295 = vcmp.gt.f32.partialorder %v257, 0.0
    %vm296 = vcmp.gt.f32.partialorder %v262, 0.0
    %vm297 = vcmp.gt.f32.partialorder %v267, 0.0
    %vm298 = vcmp.gt.f32.partialorder %v272, 0.0
    %vm299 = vcmp.gt.f32.partialorder %v277, 0.0
    %vm300 = vcmp.gt.f32.partialorder %v282, 0.0
    %vm301 = vcmp.gt.f32.partialorder %v287, 0.0
    %vm302 = vcmp.gt.f32.partialorder %v292, 0.0
    %v303 = vstv %s43
    %v304 = vmul.f32 %v303, %v257
    %v305 = vmul.f32 %v303, %v262
    %v306 = vmul.f32 %v303, %v267
    %v307 = vmul.f32 %v303, %v272
    %v308 = vmul.f32 %v303, %v277
    %v309 = vmul.f32 %v303, %v282
    %v310 = vmul.f32 %v303, %v287
    %v311 = vmul.f32 %v303, %v292
    %v312 = vsel %vm295, %v257, %v304
    %v313 = vsel %vm296, %v262, %v305
    %v314 = vsel %vm297, %v267, %v306
    %v315 = vsel %vm298, %v272, %v307
    %v316 = vsel %vm299, %v277, %v308
    %v317 = vsel %vm300, %v282, %v309
    %v318 = vsel %vm301, %v287, %v310
    %v319 = vsel %vm302, %v292, %v311
    %v320 = vld [vmem:[%s4] sm:$0xff]
    %v321 = vld [vmem:[%s4 + $0x8] sm:$0xff]
    %v322 = vld [vmem:[%s4 + $0x10] sm:$0xff]
    %v323 = vld [vmem:[%s4 + $0x18] sm:$0xff]
    %v324 = vld [vmem:[%s5] sm:$0xff]
    %v325 = vld [vmem:[%s5 + $0x8] sm:$0xff]
    %v326 = vld [vmem:[%s5 + $0x10] sm:$0xff]
    %v327 = vld [vmem:[%s5 + $0x18] sm:$0xff]
    %329 = vset.pattern.permute.xlu0 0
    %330 = vperm.xlu0 %329, %v324
    %v331 = vpop.permute.xlu0 %330
    %334 = vset.pattern.permute.xlu0 0
    %335 = vperm.xlu0 %334, %v325
    %v336 = vpop.permute.xlu0 %335
    %339 = vset.pattern.permute.xlu0 0
    %340 = vperm.xlu0 %339, %v326
    %v341 = vpop.permute.xlu0 %340
    %344 = vset.pattern.permute.xlu0 0
    %345 = vperm.xlu0 %344, %v327
    %v346 = vpop.permute.xlu0 %345
    %vm348 = vcmask 523264
    %v350 = vsel %vm348, %v320, 0
    %v353 = vsel %vm348, %v321, 0
    %v356 = vsel %vm348, %v322, 0
    %v359 = vsel %vm348, %v323, 0
    %361 = vmatprep.subr.mxu0 0.0
    %362 = vmatpush1.msra.mxu0 0.0
    %363 = vmatprep.subr.mxu0 0.0
    %364 = vmatpush1.msra.mxu0 0.0
    %365 = vmatprep.subr.mxu0 0.0
    %366 = vmatpush1.msra.mxu0 0.0
    %367 = vmatprep.subr.mxu0 0.0
    %368 = vmatpush1.msra.mxu0 0.0
    %369 = vmatprep.subr.mxu0 0.0
    %370 = vmatpush1.msra.mxu0 0.0
    %371 = vmatprep.subr.mxu0 0.0
    %372 = vmatpush1.msra.mxu0 0.0
    %373 = vmatprep.subr.mxu0 0.0
    %374 = vmatpush1.msra.mxu0 0.0
    %375 = vmatprep.subr.mxu0 0.0
    %376 = vmatpush1.msra.mxu0 0.0
    %377 = vmatprep.subr.mxu0 0.0
    %378 = vmatpush1.msra.mxu0 %v319
    %379 = vmatprep.subr.mxu0 0.0
    %380 = vmatpush1.msra.mxu0 %v318
    %381 = vmatprep.subr.mxu0 0.0
    %382 = vmatpush1.msra.mxu0 %v317
    %383 = vmatprep.subr.mxu0 0.0
    %384 = vmatpush1.msra.mxu0 %v316
    %385 = vmatprep.subr.mxu0 0.0
    %386 = vmatpush1.msra.mxu0 %v315
    %387 = vmatprep.subr.mxu0 0.0
    %388 = vmatpush1.msra.mxu0 %v314
    %389 = vmatprep.subr.mxu0 0.0
    %390 = vmatpush1.msra.mxu0 %v313
    %391 = vmatprep.subr.mxu0 0.0
    %392 = vmatpush1.msra.mxu0 %v312
    %393 = vmatprep.subr.mxu0 0.0
    %394 = vmatpush2.msra.mxu0 0.0
    %395 = vmatprep.subr.mxu0 0.0
    %396 = vmatpush2.msra.mxu0 0.0
    %397 = vmatprep.subr.mxu0 0.0
    %398 = vmatpush2.msra.mxu0 0.0
    %399 = vmatprep.subr.mxu0 0.0
    %400 = vmatpush2.msra.mxu0 0.0
    %401 = vmatprep.subr.mxu0 0.0
    %402 = vmatpush2.msra.mxu0 0.0
    %403 = vmatprep.subr.mxu0 0.0
    %404 = vmatpush2.msra.mxu0 0.0
    %405 = vmatprep.subr.mxu0 0.0
    %406 = vmatpush2.msra.mxu0 0.0
    %407 = vmatprep.subr.mxu0 0.0
    %408 = vmatpush2.msra.mxu0 0.0
    %409 = vmatprep.subr.mxu0 0.0
    %410 = vmatpush2.msra.mxu0 0.0
    %411 = vmatprep.subr.mxu0 0.0
    %412 = vmatpush2.msra.mxu0 0.0
    %413 = vmatprep.subr.mxu0 0.0
    %414 = vmatpush2.msra.mxu0 0.0
    %415 = vmatprep.subr.mxu0 0.0
    %416 = vmatpush2.msra.mxu0 0.0
    %417 = vmatprep.subr.mxu0 0.0
    %418 = vmatpush2.msra.mxu0 0.0
    %419 = vmatprep.subr.mxu0 0.0
    %420 = vmatpush2.msra.mxu0 0.0
    %421 = vmatprep.subr.mxu0 0.0
    %422 = vmatpush2.msra.mxu0 0.0
    %423 = vmatprep.subr.mxu0 0.0
    %424 = vmatpush2.msra.mxu0 0.0
    %425 = vmatprep.mubr.f32.mxu0 0.0
    %426 = vmatmul.mubr.f32.gmra.mxu0 %v350
    %v427 = vpop.f32.mrf.mxu0
    %v428 = vadd.f32 %v331, %v427
    %v429 = vpop.f32.mrf.mxu0
    %430 = vmatprep.mubr.f32.mxu0 0.0
    %431 = vmatmul.mubr.f32.gmra.mxu0 %v353
    %v432 = vpop.f32.mrf.mxu0
    %v433 = vadd.f32 %v336, %v432
    %v434 = vpop.f32.mrf.mxu0
    %435 = vmatprep.mubr.f32.mxu0 0.0
    %436 = vmatmul.mubr.f32.gmra.mxu0 %v356
    %v437 = vpop.f32.mrf.mxu0
    %v438 = vadd.f32 %v341, %v437
    %v439 = vpop.f32.mrf.mxu0
    %440 = vmatprep.mubr.f32.mxu0 0.0
    %441 = vmatmul.mubr.f32.gmra.mxu0 %v359
    %v442 = vpop.f32.mrf.mxu0
    %v443 = vadd.f32 %v346, %v442
    %v444 = vpop.f32.mrf.mxu0
    %445 = vdwg.mxu0
    %vm446 = vcmp.gt.f32.partialorder %v428, 0.0
    %vm447 = vcmp.gt.f32.partialorder %v433, 0.0
    %vm448 = vcmp.gt.f32.partialorder %v438, 0.0
    %vm449 = vcmp.gt.f32.partialorder %v443, 0.0
    %v450 = vstv %s44
    %v451 = vmul.f32 %v450, %v428
    %v452 = vmul.f32 %v450, %v433
    %v453 = vmul.f32 %v450, %v438
    %v454 = vmul.f32 %v450, %v443
    %v455 = vsel %vm446, %v428, %v451
    %v456 = vsel %vm447, %v433, %v452
    %v457 = vsel %vm448, %v438, %v453
    %v458 = vsel %vm449, %v443, %v454
    %v459 = vld [vmem:[%s6] sm:$0xff]
    %v460 = vld [vmem:[%s6 + $0x8] sm:$0xf]
    %v461 = vld [vmem:[%s7] sm:$0xff]
    %v462 = vld [vmem:[%s7 + $0x8] sm:$0xf]
    %464 = vset.pattern.permute.xlu0 0
    %465 = vperm.xlu0 %464, %v461
    %v466 = vpop.permute.xlu0 %465
    %469 = vset.pattern.permute.xlu0 0
    %470 = vperm.xlu0 %469, %v462
    %v471 = vpop.permute.xlu0 %470
    %vm473 = vcmask 261120
    %v475 = vsel %vm473, %v459, 0
    %v478 = vsel %vm473, %v460, 0
    %480 = vmatprep.subr.mxu0 0.0
    %481 = vmatpush1.msra.mxu0 0.0
    %482 = vmatprep.subr.mxu0 0.0
    %483 = vmatpush1.msra.mxu0 0.0
    %484 = vmatprep.subr.mxu0 0.0
    %485 = vmatpush1.msra.mxu0 0.0
    %486 = vmatprep.subr.mxu0 0.0
    %487 = vmatpush1.msra.mxu0 0.0
    %488 = vmatprep.subr.mxu0 0.0
    %489 = vmatpush1.msra.mxu0 0.0
    %490 = vmatprep.subr.mxu0 0.0
    %491 = vmatpush1.msra.mxu0 0.0
    %492 = vmatprep.subr.mxu0 0.0
    %493 = vmatpush1.msra.mxu0 0.0
    %494 = vmatprep.subr.mxu0 0.0
    %495 = vmatpush1.msra.mxu0 0.0
    %496 = vmatprep.subr.mxu0 0.0
    %497 = vmatpush1.msra.mxu0 0.0
    %498 = vmatprep.subr.mxu0 0.0
    %499 = vmatpush1.msra.mxu0 0.0
    %500 = vmatprep.subr.mxu0 0.0
    %501 = vmatpush1.msra.mxu0 0.0
    %502 = vmatprep.subr.mxu0 0.0
    %503 = vmatpush1.msra.mxu0 0.0
    %504 = vmatprep.subr.mxu0 0.0
    %505 = vmatpush1.msra.mxu0 %v458
    %506 = vmatprep.subr.mxu0 0.0
    %507 = vmatpush1.msra.mxu0 %v457
    %508 = vmatprep.subr.mxu0 0.0
    %509 = vmatpush1.msra.mxu0 %v456
    %510 = vmatprep.subr.mxu0 0.0
    %511 = vmatpush1.msra.mxu0 %v455
    %512 = vmatprep.subr.mxu0 0.0
    %513 = vmatpush2.msra.mxu0 0.0
    %514 = vmatprep.subr.mxu0 0.0
    %515 = vmatpush2.msra.mxu0 0.0
    %516 = vmatprep.subr.mxu0 0.0
    %517 = vmatpush2.msra.mxu0 0.0
    %518 = vmatprep.subr.mxu0 0.0
    %519 = vmatpush2.msra.mxu0 0.0
    %520 = vmatprep.subr.mxu0 0.0
    %521 = vmatpush2.msra.mxu0 0.0
    %522 = vmatprep.subr.mxu0 0.0
    %523 = vmatpush2.msra.mxu0 0.0
    %524 = vmatprep.subr.mxu0 0.0
    %525 = vmatpush2.msra.mxu0 0.0
    %526 = vmatprep.subr.mxu0 0.0
    %527 = vmatpush2.msra.mxu0 0.0
    %528 = vmatprep.subr.mxu0 0.0
    %529 = vmatpush2.msra.mxu0 0.0
    %530 = vmatprep.subr.mxu0 0.0
    %531 = vmatpush2.msra.mxu0 0.0
    %532 = vmatprep.subr.mxu0 0.0
    %533 = vmatpush2.msra.mxu0 0.0
    %534 = vmatprep.subr.mxu0 0.0
    %535 = vmatpush2.msra.mxu0 0.0
    %536 = vmatprep.subr.mxu0 0.0
    %537 = vmatpush2.msra.mxu0 0.0
    %538 = vmatprep.subr.mxu0 0.0
    %539 = vmatpush2.msra.mxu0 0.0
    %540 = vmatprep.subr.mxu0 0.0
    %541 = vmatpush2.msra.mxu0 0.0
    %542 = vmatprep.subr.mxu0 0.0
    %543 = vmatpush2.msra.mxu0 0.0
    %544 = vmatprep.mubr.f32.mxu0 0.0
    %545 = vmatmul.mubr.f32.gmra.mxu0 %v475
    %v546 = vpop.f32.mrf.mxu0
    %v547 = vadd.f32 %v466, %v546
    %v548 = vpop.f32.mrf.mxu0
    %549 = vmatprep.mubr.f32.mxu0 0.0
    %550 = vmatmul.mubr.f32.gmra.mxu0 %v478
    %v551 = vpop.f32.mrf.mxu0
    %v552 = vadd.f32 %v471, %v551
    %v553 = vpop.f32.mrf.mxu0
    %554 = vdwg.mxu0
    %555 = vst [vmem:[#allocation5] sm:$0xff] %v547
    %556 = vst [vmem:[#allocation5 + $0x8] sm:$0xf] %v552
    // Predicated region
    $region38: #{tpu_custom_call.1} parent=1 // pred_check
      _
    $region39: #{tpu_custom_call.1} parent=1 // pred_check_branch
      %558 = sbr.rel (0) target = $region41
    $region40: #{tpu_custom_call.1} parent=1 // pred_region
      %s560 = ssub.s32 256, 256
      %561 = vsyncadd [#allocation3], %s560
      %s562 = sshll.u32 [#allocation5], 4
      %s563 = int_to_ptr.vmem [resolvable:$true] %s562
      %568 = dma.vmem_to_hbm [thread:$0]  %s563, 256, %s8, [#allocation3], 128, 128, 8
    $region41: #{tpu_custom_call.1} parent=1 // pred_fallthru
      _
    // Predicated region
    $region42: #{tpu_custom_call.1} parent=1 // pred_check
      _
    $region43: #{tpu_custom_call.1} parent=1 // pred_check_branch
      %570 = sbr.rel (0) target = $region45
    $region44: #{tpu_custom_call.1} parent=1 // pred_region
      %571 = dma.done [#allocation3], 256
    $region45: #{tpu_custom_call.1} parent=1 // pred_fallthru
      _
    %572 = vsyncpa [#allocation3], 1
    %573 = vsyncpa [#allocation4], 1

</llo_original>
